<compile_context>
chip_gen: v7x
topology: tpu7x:2x2x1
jax: 0.10.0
libtpu: 0.0.40
codegen_flags: <defaults>
</compile_context>

<pallas_src>
import functools
import math

import jax
import jax.numpy as jnp
from jax import lax
from jax.experimental import pallas as pl
from jax.experimental.pallas import tpu as pltpu


# ----------------------------------------------------------------------------
# Hardware-aware sizing
# ----------------------------------------------------------------------------

@functools.lru_cache(maxsize=None)
def _vmem_budget():
    """Returns (vmem_limit_bytes, pipeline_byte_budget) per TPU generation."""
    phys = 64 * 1024 * 1024                      # conservative default (v7x)
    try:
        cap = getattr(pltpu.get_tpu_info(), "vmem_capacity_bytes", None)
        if cap:
            phys = int(cap)
    except Exception:
        pass
    if phys >= 128 * 1024 * 1024:                # v5e / v6e: 128 MiB physical
        return 64 * 1024 * 1024, 16 * 1024 * 1024
    return 44 * 1024 * 1024, 8 * 1024 * 1024     # v7x: 64 MiB physical


def _sublane_min(dtype):
    # f32 -> 8, bf16 -> 16, int8/fp8 -> 32 sublanes per vreg.
    return {4: 8, 2: 16, 1: 32}.get(jnp.dtype(dtype).itemsize, 8)


def _pick_tile(dim, granule, budget, bytes_per_unit, align=None, cap=32768):
    """Largest tile (multiple of `granule`, <=cap) fitting the byte budget."""
    t = budget // max(1, bytes_per_unit)
    t = min(t, cap)
    t = max(granule, (t // granule) * granule)
    if align is not None:
        a = (granule * align) // math.gcd(granule, align)
        if a <= t:
            t = (t // a) * a
    if t >= dim:
        return dim, 1
    return t, -(-dim // t)


# ----------------------------------------------------------------------------
# Kernel
# ----------------------------------------------------------------------------

def _acc_shape(rows, lanes):
    ar = 8 if (rows % 8 == 0) else rows
    al = 128 if (lanes % 128 == 0) else lanes
    return ar, al


def _make_kernel(rows, lanes, num_splits, sps, ragged, ragged_axis, valid,
                 tail_off):
    """acc += fold((s - t)^2 * w); fold keeps the accumulator <= (8, 128)."""
    ar, al = _acc_shape(rows, lanes)

    def fold(x):
        # Stage 1: fold sublane-tile groups of 8 rows.  The reshape is a pure
        # relabeling (no relayout); the sum is vreg + vreg VPU adds.
        if rows > ar:
            x = x.reshape(rows // 8, 8, lanes).sum(axis=0)
        # Stage 2: fold lane-tile groups of 128 lanes with static, vreg-aligned
        # slices (pure VPU adds, no XLU).
        if lanes > al:
            acc = x[:, 0:al]
            for j in range(1, lanes // al):
                acc = acc + x[:, j * al:(j + 1) * al]
            x = acc
        return x

    def kernel(s_ref, t_ref, w_ref, out_ref, acc_ref):
        c = pl.program_id(0)      # core-split axis ("parallel")
        i = pl.program_id(1)      # streaming axis ("arbitrary")

        @pl.when(i == 0)
        def _init():
            acc_ref[...] = jnp.zeros_like(acc_ref)

        d = s_ref[...].astype(jnp.float32) - t_ref[...].astype(jnp.float32)
        contrib = d * d * w_ref[...]

        if ragged:
            # Only the globally last block can read past the real extent, so
            # the (iota + compare + select) mask runs once, not every step.
            is_tail = jnp.logical_and(c == num_splits - 1, i == sps - 1)

            @pl.when(jnp.logical_not(is_tail))
            def _body():
                acc_ref[...] += fold(contrib)

            @pl.when(is_tail)
            def _tail():
                idx = tail_off + lax.broadcasted_iota(
                    jnp.int32, contrib.shape, ragged_axis)
                acc_ref[...] += fold(jnp.where(idx < valid, contrib, 0.0))
        else:
            acc_ref[...] += fold(contrib)

        @pl.when(i == sps - 1)
        def _fin():
            out_ref[...] = acc_ref[...]     # tiny block; wrapper does final sum

    return kernel, (ar, al)


# ----------------------------------------------------------------------------
# Wrapper: sum over (R, L) of (s - t)^2 * w, w varying along `tiled_axis`
# ----------------------------------------------------------------------------

def _weighted_sqerr_sum(s2, t2, w_tiled, *, tiled_axis, weight_period=None,
                        tile=None):
    assert s2.shape == t2.shape and s2.ndim == 2
    R, L = s2.shape
    dim = s2.shape[tiled_axis]
    isz = jnp.dtype(s2.dtype).itemsize
    w_tiled = w_tiled.astype(jnp.float32).reshape(dim)

    vmem_limit, budget = _vmem_budget()

    if tiled_axis == 0:
        granule = _sublane_min(s2.dtype)
        # 2 inputs x 2 buffers x (tile x L_pad) + per-step (tile, 1) weight
        # (which pads to 128 lanes in VMEM).
        bpu = 4 * (-(-L // 128) * 128) * isz + 2 * 128 * 4
    else:
        granule = 128
        # 2 inputs x 2 buffers x (R_pad x tile) + per-step (1, tile) weight.
        bpu = 4 * (-(-R // 8) * 8) * isz + 2 * 8 * 4

    if tile is None:
        align = weight_period if (tiled_axis == 0 and weight_period) else None
        tile, steps = _pick_tile(dim, granule, budget, bpu, align)
    else:
        tile = min(tile, dim)
        steps = -(-dim // tile)

    # 2-way core split (v7x megacore); harmless size-1 axis elsewhere.
    num_splits = 2 if (steps >= 4 and steps % 2 == 0) else 1
    sps = steps // num_splits
    padded = steps * tile
    ragged = padded != dim

    # Weight operand + spec.  Resident when the block pattern repeats.
    resident_w = (steps == 1) or (
        tiled_axis == 0 and weight_period is not None
        and tile % weight_period == 0)
    if tiled_axis == 0:
        if resident_w:
            w_arr = w_tiled[:tile].reshape(tile, 1)
            w_spec = pl.BlockSpec((tile, 1), lambda c, i: (0, 0))
        else:
            w_pad = jnp.pad(w_tiled, (0, padded - dim)) if ragged else w_tiled
            w_arr = w_pad.reshape(padded, 1)
            w_spec = pl.BlockSpec((tile, 1), lambda c, i: (c * sps + i, 0))
        blk = (tile, L)
        idx = lambda c, i: (c * sps + i, 0)
    else:
        if resident_w:
            w_arr = w_tiled[:tile].reshape(1, tile)
            w_spec = pl.BlockSpec((1, tile), lambda c, i: (0, 0))
        else:
            w_pad = jnp.pad(w_tiled, (0, padded - dim)) if ragged else w_tiled
            w_arr = w_pad.reshape(1, padded)
            w_spec = pl.BlockSpec((1, tile), lambda c, i: (0, c * sps + i))
        blk = (R, tile)
        idx = lambda c, i: (0, c * sps + i)

    kernel, (ar, al) = _make_kernel(
        blk[0], blk[1], num_splits, sps, ragged, tiled_axis, dim,
        (steps - 1) * tile)

    out = pl.pallas_call(
        kernel,
        out_shape=jax.ShapeDtypeStruct((num_splits, ar, al), jnp.float32),
        grid_spec=pltpu.PrefetchScalarGridSpec(
            num_scalar_prefetch=0,
            grid=(num_splits, sps),
            in_specs=[
                pl.BlockSpec(blk, idx),      # student slab
                pl.BlockSpec(blk, idx),      # teacher slab
                w_spec,                      # weight (row or lane vector)
            ],
            out_specs=pl.BlockSpec((None, ar, al), lambda c, i: (c, 0, 0)),
            scratch_shapes=[pltpu.VMEM((ar, al), jnp.float32)],
        ),
        compiler_params=pltpu.CompilerParams(
            dimension_semantics=("parallel", "arbitrary"),
            vmem_limit_bytes=vmem_limit,
        ),
        cost_estimate=pl.CostEstimate(
            flops=4 * R * L,
            transcendentals=0,
            bytes_accessed=2 * R * L * isz + int(w_arr.size) * 4
            + num_splits * ar * al * 4,
        ),
    )(s2, t2, w_arr)
    return jnp.sum(out)


# ----------------------------------------------------------------------------
# BlockHintLoss.forward
# ----------------------------------------------------------------------------

def block_hint_loss(f_s, f_t, weights=None):
    """Pallas implementation of BlockHintLoss.forward."""
    if weights is None:
        weights = [jnp.ones((f.shape[1], 1, 1), jnp.float32) for f in f_s]

    total = jnp.float32(0.0)
    for s, t, w in zip(f_s, f_t, weights):
        N, C, H, W = s.shape
        HW = H * W
        numel = N * C * HW
        # (s*w - t*w)^2 == (s - t)^2 * w^2; only w^2 is folded per element,
        # mean (1/numel) and the 0.25 factor are applied on the final scalar.
        w2 = jnp.square(w.reshape(C).astype(jnp.float32))

        if HW % 128 == 0 or (C * HW) % 128 != 0:
            # Row layout: (N*C, H*W), per-row weight (period C).
            s2 = s.reshape(N * C, HW)
            t2 = t.reshape(N * C, HW)
            w_rows = jnp.tile(w2, N)
            part = _weighted_sqerr_sum(
                s2, t2, w_rows, tiled_axis=0, weight_period=C)
        else:
            # Lane-dense layout for H*W not a multiple of 128 (7x7, 14x14, ...):
            # (N, C*H*W) slab, per-lane weight (w2 repeated over H*W).
            s2 = s.reshape(N, C * HW)
            t2 = t.reshape(N, C * HW)
            w_lanes = jnp.repeat(w2, HW)
            part = _weighted_sqerr_sum(s2, t2, w_lanes, tiled_axis=1)

        total = total + part * jnp.float32(1.0 / numel)
    return total * jnp.float32(0.25)


def _reference(f_s, f_t, weights):
    loss = jnp.float32(0.0)
    for s, t, w in zip(f_s, f_t, weights):
        sw = s * w[None]
        tw = t * w[None]
        loss = loss + jnp.mean((sw - tw) ** 2)
    return loss * jnp.float32(0.25)


if __name__ == "__main__":
    key = jax.random.PRNGKey(0)
    # Two "blocks": HW=256 exercises the row layout, HW=64 the lane layout.
    shapes = [(2, 4, 16, 16), (2, 8, 8, 8)]
    f_s, f_t, weights = [], [], []
    for shp in shapes:
        key, k1, k2, k3 = jax.random.split(key, 4)
        f_s.append(jax.random.normal(k1, shp, dtype=jnp.float32))
        f_t.append(jax.random.normal(k2, shp, dtype=jnp.float32))
        weights.append(jax.random.uniform(k3, (shp[1], 1, 1), dtype=jnp.float32))

    loss = jax.block_until_ready(block_hint_loss(f_s, f_t, weights))
    ref = _reference(f_s, f_t, weights)
    assert jnp.allclose(loss, ref, rtol=1e-4, atol=1e-6), (loss, ref)

    # Multi-step grid + ragged row tail + 2-way core split (row layout).
    key, k1, k2, k3 = jax.random.split(key, 4)
    M, K = 60, 128                      # tile=16 -> 4 steps, padded to 64 rows
    s2 = jax.random.normal(k1, (M, K), dtype=jnp.float32)
    t2 = jax.random.normal(k2, (M, K), dtype=jnp.float32)
    wr = jax.random.uniform(k3, (M,), dtype=jnp.float32)
    got = jax.block_until_ready(
        _weighted_sqerr_sum(s2, t2, wr, tiled_axis=0, tile=16))
    want = jnp.sum(((s2 - t2) ** 2) * wr[:, None])
    assert jnp.allclose(got, want, rtol=1e-4, atol=1e-5), (got, want)

    # Multi-step grid + ragged lane tail + 2-way core split (lane layout).
    key, k1, k2, k3 = jax.random.split(key, 4)
    R2, L2 = 4, 900                     # tile=256 -> 4 steps, padded to 1024
    s3 = jax.random.normal(k1, (R2, L2), dtype=jnp.float32)
    t3 = jax.random.normal(k2, (R2, L2), dtype=jnp.float32)
    wl = jax.random.uniform(k3, (L2,), dtype=jnp.float32)
    got2 = jax.block_until_ready(
        _weighted_sqerr_sum(s3, t3, wl, tiled_axis=1, tile=256))
    want2 = jnp.sum(((s3 - t3) ** 2) * wl[None, :])
    assert jnp.allclose(got2, want2, rtol=1e-4, atol=1e-5), (got2, want2)

    print("KERNEL_OK")
</pallas_src>

<mosaic_0001>
module attributes {stable_mosaic.version = 11 : i64} {
  func.func @kernel(%arg0: i32, %arg1: i32, %arg2: memref<8x256xf32, #tpu.memory_space<vmem>>, %arg3: memref<8x256xf32, #tpu.memory_space<vmem>>, %arg4: memref<8x1xf32, #tpu.memory_space<vmem>>, %arg5: memref<1x8x128xf32, #tpu.memory_space<vmem>>, %arg6: memref<8x128xf32, #tpu.memory_space<vmem>>) attributes {dimension_semantics = [#tpu.dimension_semantics<parallel>, #tpu.dimension_semantics<arbitrary>], iteration_bounds = array<i64: 1, 1>, scalar_prefetch = 0 : i64, scratch_operands = 1 : i64, tpu.core_type = #tpu.core_type<tc>, window_params = [{transform_indices = @transform_0, window_bounds = array<i64: 8, 256>}, {transform_indices = @transform_1, window_bounds = array<i64: 8, 256>}, {pipeline_mode = #tpu.pipeline_mode<synchronous>, transform_indices = @transform_2, window_bounds = array<i64: 8, 1>}, {transform_indices = @transform_3, window_bounds = array<i64: 1, 8, 128>}]} {
    %c0_i32 = arith.constant 0 : i32
    %0 = arith.cmpi eq, %arg1, %c0_i32 : i32
    %1 = arith.extui %0 : i1 to i32
    %c0_i32_0 = arith.constant 0 : i32
    %2 = arith.cmpi ne, %1, %c0_i32_0 : i32
    scf.if %2 {
      %cst = arith.constant 0.000000e+00 : f32
      %19 = vector.broadcast %cst : f32 to vector<8x128xf32>
      %c0_12 = arith.constant 0 : index
      %c0_13 = arith.constant 0 : index
      %20 = vector.load %arg6[%c0_12, %c0_13] : memref<8x128xf32, #tpu.memory_space<vmem>>, vector<8x128xf32>
      tpu.vector_store %arg6[%c0_12, %c0_13], %19 {strides = array<i32>} : memref<8x128xf32, #tpu.memory_space<vmem>>, vector<8x128xf32>,
    } else {
    }
    %c0 = arith.constant 0 : index
    %c0_1 = arith.constant 0 : index
    %3 = vector.load %arg2[%c0, %c0_1] : memref<8x256xf32, #tpu.memory_space<vmem>>, vector<8x256xf32>
    %c0_2 = arith.constant 0 : index
    %c0_3 = arith.constant 0 : index
    %4 = vector.load %arg3[%c0_2, %c0_3] : memref<8x256xf32, #tpu.memory_space<vmem>>, vector<8x256xf32>
    %5 = arith.subf %3, %4 : vector<8x256xf32>
    %6 = arith.mulf %5, %5 : vector<8x256xf32>
    %c0_4 = arith.constant 0 : index
    %c0_5 = arith.constant 0 : index
    %7 = vector.load %arg4[%c0_4, %c0_5] : memref<8x1xf32, #tpu.memory_space<vmem>>, vector<8x1xf32>
    %8 = vector.broadcast %7 : vector<8x1xf32> to vector<8x256xf32>
    %9 = arith.mulf %6, %8 : vector<8x256xf32>
    %c0_6 = arith.constant 0 : index
    %c0_7 = arith.constant 0 : index
    %10 = vector.load %arg6[%c0_6, %c0_7] : memref<8x128xf32, #tpu.memory_space<vmem>>, vector<8x128xf32>
    %11 = vector.extract_strided_slice %9 {offsets = [0, 0], sizes = [8, 128], strides = [1, 1]} : vector<8x256xf32> to vector<8x128xf32>
    %12 = vector.extract_strided_slice %9 {offsets = [0, 128], sizes = [8, 128], strides = [1, 1]} : vector<8x256xf32> to vector<8x128xf32>
    %13 = arith.addf %11, %12 : vector<8x128xf32>
    %14 = arith.addf %10, %13 : vector<8x128xf32>
    %c0_8 = arith.constant 0 : index
    %c0_9 = arith.constant 0 : index
    %15 = vector.load %arg6[%c0_8, %c0_9] : memref<8x128xf32, #tpu.memory_space<vmem>>, vector<8x128xf32>
    tpu.vector_store %arg6[%c0_8, %c0_9], %14 {strides = array<i32>} : memref<8x128xf32, #tpu.memory_space<vmem>>, vector<8x128xf32>,
    %c0_i32_10 = arith.constant 0 : i32
    %16 = arith.cmpi eq, %arg1, %c0_i32_10 : i32
    %17 = arith.extui %16 : i1 to i32
    %c0_i32_11 = arith.constant 0 : i32
    %18 = arith.cmpi ne, %17, %c0_i32_11 : i32
    scf.if %18 {
      %c0_12 = arith.constant 0 : index
      %c0_13 = arith.constant 0 : index
      %19 = vector.load %arg6[%c0_12, %c0_13] : memref<8x128xf32, #tpu.memory_space<vmem>>, vector<8x128xf32>
      %c0_14 = arith.constant 0 : index
      %c0_15 = arith.constant 0 : index
      %c0_16 = arith.constant 0 : index
      %20 = vector.load %arg5[%c0_14, %c0_15, %c0_16] : memref<1x8x128xf32, #tpu.memory_space<vmem>>, vector<1x8x128xf32>
      %21 = vector.shape_cast %20 : vector<1x8x128xf32> to vector<8x128xf32>
      %22 = vector.shape_cast %19 : vector<8x128xf32> to vector<1x8x128xf32>
      tpu.vector_store %arg5[%c0_14, %c0_15, %c0_16], %22 {strides = array<i32>} : memref<1x8x128xf32, #tpu.memory_space<vmem>>, vector<1x8x128xf32>,
    } else {
    }
    return
  }
  func.func @transform_0(%arg0: i32, %arg1: i32) -> (i32, i32) {
    %c1_i32 = arith.constant 1 : i32
    %0 = arith.muli %arg0, %c1_i32 : i32
    %1 = arith.addi %0, %arg1 : i32
    %c0_i32 = arith.constant 0 : i32
    %c0_i32_0 = arith.constant 0 : i32
    return %1, %c0_i32 : i32, i32
  }
  func.func @transform_1(%arg0: i32, %arg1: i32) -> (i32, i32) {
    %c1_i32 = arith.constant 1 : i32
    %0 = arith.muli %arg0, %c1_i32 : i32
    %1 = arith.addi %0, %arg1 : i32
    %c0_i32 = arith.constant 0 : i32
    %c0_i32_0 = arith.constant 0 : i32
    return %1, %c0_i32 : i32, i32
  }
  func.func @transform_2(%arg0: i32, %arg1: i32) -> (i32, i32) {
    %c0_i32 = arith.constant 0 : i32
    %c0_i32_0 = arith.constant 0 : i32
    %c0_i32_1 = arith.constant 0 : i32
    return %c0_i32, %c0_i32_0 : i32, i32
  }
  func.func @transform_3(%arg0: i32, %arg1: i32) -> (i32, i32, i32) {
    %c0_i32 = arith.constant 0 : i32
    %c0_i32_0 = arith.constant 0 : i32
    %c0_i32_1 = arith.constant 0 : i32
    return %arg0, %c0_i32, %c0_i32_0 : i32, i32, i32
  }
}

</mosaic_0001>

<llo_original>
// kernel: tpu_custom_call.1
$region0: #{tpu_custom_call.1}
  #allocation0 [shape = 'u32[]', space=smem, size = 0x4, offset = 0x4, fixed_abs, tag = 'smem constant byte address 0x4 - core index']
  #allocation1 [shape = 'u32[144,128]{1,0:T(1,128)}', space=vmem, size = 0x12000, scoped, tag = 'internal scratch']
  #allocation2 [shape = 'f32[8,128]{1,0:T(8,128)}', space=vmem, size = 0x1000, scoped, tag = 'scratch operand']
  %s0 = inlined_call_operand.hbm [shape: f32[8,256], index: 0, kind: input, shape index: {}]
  %s1 = inlined_call_operand.hbm [shape: f32[8,256], index: 1, kind: input, shape index: {}]
  %s2 = inlined_call_operand.vmem [shape: f32[8,1], index: 2, kind: input, shape index: {}]
  %s3 = inlined_call_operand.hbm [shape: f32[1,8,128], index: 3, kind: output, shape index: {}]
  %s4 = sld [smem:[#allocation0]]
  $region38: #{tpu_custom_call.1} parent=0
    _
  %s6 = ssub.s32 1, %s4
  %s7 = scalar_select 0, %s6, %s4
  $region1: #{tpu_custom_call.1} parent=0
    #allocation3 [shape = 'u8[8192]{0}', space=vmem, size = 0x2000, scoped, tag = 'input window, operand 0, single buffered']
    #allocation4 [shape = 's32[1]{0}', space=sflag, size = 0x4, scoped, tag = 'scoped memory for tpu_custom_call.1']
    #allocation5 [shape = 's32[1]{0}', space=sflag, size = 0x4, scoped, tag = 'scoped memory for tpu_custom_call.1']
    #allocation6 [shape = 'u8[8192]{0}', space=vmem, size = 0x2000, scoped, tag = 'input window, operand 1, single buffered']
    #allocation7 [shape = 's32[1]{0}', space=sflag, size = 0x4, scoped, tag = 'scoped memory for tpu_custom_call.1']
    #allocation8 [shape = 'u8[4096]{0}', space=vmem, size = 0x1000, scoped, tag = 'output window, operand 0, single buffered']
    %8 = vsyncpa [#allocation4], 0
    %9 = vsyncpa [#allocation7], 0
    %10 = vsyncpa [#allocation5], 0
    // Predicated region
    $region2: #{tpu_custom_call.1} parent=1 // pred_check
      _
    $region3: #{tpu_custom_call.1} parent=1 // pred_check_branch
      %12 = sbr.rel (0) target = $region5
    $region4: #{tpu_custom_call.1} parent=1 // pred_region
      %s13 = sadd.s32 0, 0
      %s15 = ssub.s32 256, 256
      %16 = vsyncadd [#allocation4], %s15
      %s17 = smul.addr %s13, 2
      %s18 = smul.addr %s17, 128
      %s19 = scalar_lea.hbm %s0, %s18
      %s21 = sshll.u32 [#allocation3], 4
      %s22 = int_to_ptr.vmem [resolvable:$true] %s21
      %24 = dma.hbm_to_vmem [thread:$0]  %s19, 256, %s22, [#allocation4]
    $region5: #{tpu_custom_call.1} parent=1 // pred_fallthru
      _
    // Predicated region
    $region6: #{tpu_custom_call.1} parent=1 // pred_check
      _
    $region7: #{tpu_custom_call.1} parent=1 // pred_check_branch
      %26 = sbr.rel (0) target = $region9
    $region8: #{tpu_custom_call.1} parent=1 // pred_region
      %s27 = sadd.s32 0, 0
      %s29 = ssub.s32 256, 256
      %30 = vsyncadd [#allocation7], %s29
      %s31 = smul.addr %s27, 2
      %s32 = smul.addr %s31, 128
      %s33 = scalar_lea.hbm %s1, %s32
      %s35 = sshll.u32 [#allocation6], 4
      %s36 = int_to_ptr.vmem [resolvable:$true] %s35
      %38 = dma.hbm_to_vmem [thread:$0]  %s33, 256, %s36, [#allocation7]
    $region9: #{tpu_custom_call.1} parent=1 // pred_fallthru
      _
    // Predicated region
    $region10: #{tpu_custom_call.1} parent=1 // pred_check
      _
    $region11: #{tpu_custom_call.1} parent=1 // pred_check_branch
      %40 = sbr.rel (0) target = $region13
    $region12: #{tpu_custom_call.1} parent=1 // pred_region
      _
    $region13: #{tpu_custom_call.1} parent=1 // pred_fallthru
      _
    // Predicated region
    $region14: #{tpu_custom_call.1} parent=1 // pred_check
      _
    $region15: #{tpu_custom_call.1} parent=1 // pred_check_branch
      %42 = sbr.rel (0) target = $region17
    $region16: #{tpu_custom_call.1} parent=1 // pred_region
      %43 = dma.done [#allocation4], 256
    $region17: #{tpu_custom_call.1} parent=1 // pred_fallthru
      _
    // Predicated region
    $region18: #{tpu_custom_call.1} parent=1 // pred_check
      _
    $region19: #{tpu_custom_call.1} parent=1 // pred_check_branch
      %45 = sbr.rel (0) target = $region21
    $region20: #{tpu_custom_call.1} parent=1 // pred_region
      %46 = dma.done [#allocation7], 256
    $region21: #{tpu_custom_call.1} parent=1 // pred_fallthru
      _
    %s47 = sadd.s32 0, 0
    %s48 = sadd.s32 0, 0
    %p49 = scmp.eq.s32.totalorder 0, 0
    // Predicated region
    $region22: #{tpu_custom_call.1} parent=1 // pred_check
      %p50 = pneg %p49
    $region23: #{tpu_custom_call.1} parent=1 // pred_check_branch
      %52 = sbr.rel (%p50) target = $region25
    $region24: #{tpu_custom_call.1} parent=1 // pred_region
      %53 = vst [vmem:[#allocation2] sm:$0xff] 0.0
    $region25: #{tpu_custom_call.1} parent=1 // pred_fallthru
      _
    %v54 = vld [vmem:[#allocation3] sm:$0xff]
    %v55 = vld [vmem:[#allocation3 + $0x8] sm:$0xff]
    %v56 = vld [vmem:[#allocation6] sm:$0xff]
    %v57 = vld [vmem:[#allocation6 + $0x8] sm:$0xff]
    %v58 = vsub.f32 %v54, %v56
    %v59 = vsub.f32 %v55, %v57
    %v60 = vmul.f32 %v58, %v58
    %v61 = vmul.f32 %v59, %v59
    %v62 = vld [vmem:[%s2] sm:$0xff]
    %64 = vset.pattern.permute.xlu0 0
    %65 = vperm.xlu0 %64, %v62
    %v66 = vpop.permute.xlu0 %65
    %v68 = vmul.f32 %v60, %v66
    %v69 = vmul.f32 %v61, %v66
    %v70 = vld [vmem:[#allocation2] sm:$0xff]
    %v71 = vadd.f32 %v68, %v69
    %v72 = vadd.f32 %v70, %v71
    %73 = vst [vmem:[#allocation2] sm:$0xff] %v72
    // Predicated region
    $region26: #{tpu_custom_call.1} parent=1 // pred_check
      %p74 = pneg %p49
    $region27: #{tpu_custom_call.1} parent=1 // pred_check_branch
      %76 = sbr.rel (%p74) target = $region29
    $region28: #{tpu_custom_call.1} parent=1 // pred_region
      %v77 = vld [vmem:[#allocation2] sm:$0xff]
      %78 = vst [vmem:[#allocation8] sm:$0xff] %v77
    $region29: #{tpu_custom_call.1} parent=1 // pred_fallthru
      _
    // Predicated region
    $region30: #{tpu_custom_call.1} parent=1 // pred_check
      _
    $region31: #{tpu_custom_call.1} parent=1 // pred_check_branch
      %80 = sbr.rel (0) target = $region33
    $region32: #{tpu_custom_call.1} parent=1 // pred_region
      %s82 = ssub.s32 128, 128
      %83 = vsyncadd [#allocation5], %s82
      %s85 = sshll.u32 [#allocation8], 4
      %s86 = int_to_ptr.vmem [resolvable:$true] %s85
      %88 = dma.vmem_to_hbm [thread:$0]  %s86, 128, %s3, [#allocation5]
    $region33: #{tpu_custom_call.1} parent=1 // pred_fallthru
      _
    // Predicated region
    $region34: #{tpu_custom_call.1} parent=1 // pred_check
      _
    $region35: #{tpu_custom_call.1} parent=1 // pred_check_branch
      %90 = sbr.rel (0) target = $region37
    $region36: #{tpu_custom_call.1} parent=1 // pred_region
      %91 = dma.done [#allocation5], 128
    $region37: #{tpu_custom_call.1} parent=1 // pred_fallthru
      _
    %92 = vsyncpa [#allocation4], 1
    %93 = vsyncpa [#allocation7], 1
    %94 = vsyncpa [#allocation5], 1

</llo_original>
